<compile_context>
chip_gen: v7x
topology: tpu7x:2x2x1
jax: 0.10.0
libtpu: 0.0.40
codegen_flags: <defaults>
</compile_context>

<pallas_src>
import functools
import math

import jax
import jax.numpy as jnp
from jax import lax
from jax.experimental import pallas as pl
from jax.experimental.pallas import tpu as pltpu


# ----------------------------------------------------------------------------
# helpers
# ----------------------------------------------------------------------------

def _pick_tile(dim, candidates):
    """Largest candidate tile that evenly divides `dim`, else the full dim."""
    for c in candidates:
        if dim >= c and dim % c == 0:
            return c
    return dim


def _vmem_limit_bytes():
    # Raise the scoped-VMEM limit above the 16/32 MiB defaults, with headroom
    # per generation (v7x only has 64 MiB physical per TensorCore).
    try:
        cap = pltpu.get_tpu_info().vmem_capacity_bytes
    except Exception:
        cap = 64 * 1024 * 1024
    return int(min(cap * 3 // 4, 100 * 1024 * 1024))


def _pad_axis(x, axis, multiple):
    """Zero-pad `axis` of x up to a multiple of `multiple`."""
    n = x.shape[axis]
    pad = (-n) % multiple
    if pad == 0:
        return x, n
    widths = [(0, 0)] * x.ndim
    widths[axis] = (0, pad)
    return jnp.pad(x, widths), n


# ----------------------------------------------------------------------------
# tiled linear kernels: y = x @ w (+ b), bf16 MXU inputs, f32 accumulation
# ----------------------------------------------------------------------------

def _matmul_kernel(x_ref, w_ref, o_ref, acc_ref):
    @pl.when(pl.program_id(2) == 0)
    def _():
        acc_ref[...] = jnp.zeros_like(acc_ref)

    # Inputs already bf16 from HBM (no in-kernel casts); f32 accumulation.
    acc_ref[...] += jnp.dot(x_ref[...], w_ref[...],
                            preferred_element_type=jnp.float32)

    @pl.when(pl.program_id(2) == pl.num_programs(2) - 1)
    def _():
        o_ref[...] = acc_ref[...].astype(o_ref.dtype)


def _matmul_bias_kernel(x_ref, w_ref, b_ref, o_ref, acc_ref):
    @pl.when(pl.program_id(2) == 0)
    def _():
        acc_ref[...] = jnp.zeros_like(acc_ref)

    acc_ref[...] += jnp.dot(x_ref[...], w_ref[...],
                            preferred_element_type=jnp.float32)

    @pl.when(pl.program_id(2) == pl.num_programs(2) - 1)
    def _():
        o_ref[...] = (acc_ref[...] + b_ref[...]).astype(o_ref.dtype)


def _linear(x2, w, b=None, *, out_dtype):
    """x2: (M, K) bf16, w: (K, N) bf16, b: (N,) f32 or None -> (M, N)."""
    M, K = x2.shape
    K2, N = w.shape
    assert K == K2

    # Pad rows so we never fall back to a huge misaligned full-dim block.
    row_align = 128 if M > 128 else 8
    x2, _ = _pad_axis(x2, 0, row_align)
    Mp = x2.shape[0]

    # 256-aligned tiles preferred (v6e/v7x 256-wide MXU); tn capped at 256 so
    # the N axis keeps >=2 parallel blocks for v7x's two TensorCores.
    tm = _pick_tile(Mp, (256, 128))
    tn = _pick_tile(N, (256, 128))
    tk = _pick_tile(K, (512, 256, 128))
    grid = (Mp // tm, N // tn, K // tk)

    x_spec = pl.BlockSpec((tm, tk), lambda i, j, k: (i, k))
    if K // tk >= 3:
        # v7x: spend VMEM headroom on deeper pipelining of the streamed weight
        # operand rather than larger tiles.
        w_spec = pl.BlockSpec((tk, tn), lambda i, j, k: (k, j),
                              pipeline_mode=pl.Buffered(3))
    else:
        w_spec = pl.BlockSpec((tk, tn), lambda i, j, k: (k, j))
    out_spec = pl.BlockSpec((tm, tn), lambda i, j, k: (i, j))

    if b is None:
        kernel = _matmul_kernel
        in_specs = [x_spec, w_spec]
        operands = (x2, w)
    else:
        kernel = _matmul_bias_kernel
        in_specs = [x_spec, w_spec,
                    pl.BlockSpec((1, tn), lambda i, j, k: (0, j))]
        operands = (x2, w, b.reshape(1, N))

    out = pl.pallas_call(
        kernel,
        out_shape=jax.ShapeDtypeStruct((Mp, N), out_dtype),
        grid_spec=pltpu.PrefetchScalarGridSpec(
            num_scalar_prefetch=0,
            grid=grid,
            in_specs=in_specs,
            out_specs=out_spec,
            scratch_shapes=[pltpu.VMEM((tm, tn), jnp.float32)],
        ),
        compiler_params=pltpu.CompilerParams(
            dimension_semantics=("parallel", "parallel", "arbitrary"),
            vmem_limit_bytes=_vmem_limit_bytes(),
        ),
    )(*operands)
    return out[:M] if Mp != M else out


# ----------------------------------------------------------------------------
# flash-style causal attention kernel (online softmax)
# ----------------------------------------------------------------------------

def _flash_kernel(q_ref, k_ref, v_ref, o_ref, m_sc, l_sc, acc_sc, *, tq, tk):
    qi = pl.program_id(1)
    ki = pl.program_id(2)

    @pl.when(ki == 0)
    def _():
        m_sc[...] = jnp.full_like(m_sc, -jnp.inf)
        l_sc[...] = jnp.zeros_like(l_sc)
        acc_sc[...] = jnp.zeros_like(acc_sc)

    def _scores():
        # Contract on D directly (no explicit K transpose).  The 1/sqrt(D)
        # scale is already folded into the Q columns of the QKV weight, so q
        # needs no per-step rescale or recast (it is bf16 from HBM).
        return lax.dot_general(q_ref[0], k_ref[0], (((1,), (1,)), ((), ())),
                               preferred_element_type=jnp.float32)  # (tq, tk)

    def _accumulate(s):
        m_prev = m_sc[...]
        m_new = jnp.maximum(m_prev, jnp.max(s, axis=-1, keepdims=True))
        alpha = jnp.exp(m_prev - m_new)
        p = jnp.exp(s - m_new)                                # f32 softmax math
        l_sc[...] = alpha * l_sc[...] + jnp.sum(p, axis=-1, keepdims=True)
        acc_sc[...] = alpha * acc_sc[...] + jnp.dot(
            p.astype(jnp.bfloat16), v_ref[0], preferred_element_type=jnp.float32)
        m_sc[...] = m_new

    # Interior blocks (strictly below the diagonal): no masking work at all.
    @pl.when(ki < qi)
    def _():
        _accumulate(_scores())

    # Diagonal block (tq == tk): apply the causal mask with local indices, then
    # finalize -- this is the last step that does real work for this q block.
    @pl.when(ki == qi)
    def _():
        s = _scores()
        row = lax.broadcasted_iota(jnp.int32, (tq, tk), 0)
        col = lax.broadcasted_iota(jnp.int32, (tq, tk), 1)
        _accumulate(jnp.where(row >= col, s, -jnp.inf))
        # Exact normalization (runs once per q block -> off the hot path).
        o_ref[0] = (acc_sc[...] / l_sc[...]).astype(o_ref.dtype)

    # Steps with ki > qi do nothing; their K/V index_map is clamped to the
    # diagonal block so no DMA is issued for them either.


def _flash_attention(q, k, v):
    """q, k, v: (B*H, T, D) bf16 -> (B*H, T, D) bf16 causal attention."""
    BH, T, D = q.shape

    # Pad T so the tiling stays (8,128)-friendly; padded key columns sit above
    # the causal diagonal for every real query row, so they are masked out.
    t_align = 128 if T > 128 else 8
    q, _ = _pad_axis(q, 1, t_align)
    k, _ = _pad_axis(k, 1, t_align)
    v, _ = _pad_axis(v, 1, t_align)
    Tp = q.shape[1]

    tq = _pick_tile(Tp, (256, 128))
    tk = tq  # equal tiles: diagonal-block masking + clamped K/V index maps

    kernel = functools.partial(_flash_kernel, tq=tq, tk=tk)
    out = pl.pallas_call(
        kernel,
        out_shape=jax.ShapeDtypeStruct((BH, Tp, D), q.dtype),
        grid_spec=pltpu.PrefetchScalarGridSpec(
            num_scalar_prefetch=0,
            grid=(BH, Tp // tq, Tp // tk),
            in_specs=[
                pl.BlockSpec((1, tq, D), lambda b, qi, ki: (b, qi, 0)),
                # Clamp ki: above-diagonal steps repeat the previous block
                # index, so the pipeline issues no new K/V copies for them.
                pl.BlockSpec((1, tk, D),
                             lambda b, qi, ki: (b, jnp.minimum(ki, qi), 0)),
                pl.BlockSpec((1, tk, D),
                             lambda b, qi, ki: (b, jnp.minimum(ki, qi), 0)),
            ],
            out_specs=pl.BlockSpec((1, tq, D), lambda b, qi, ki: (b, qi, 0)),
            scratch_shapes=[
                pltpu.VMEM((tq, 1), jnp.float32),   # running max m
                pltpu.VMEM((tq, 1), jnp.float32),   # running sum l
                pltpu.VMEM((tq, D), jnp.float32),   # output accumulator
            ],
        ),
        compiler_params=pltpu.CompilerParams(
            dimension_semantics=("parallel", "parallel", "arbitrary"),
            vmem_limit_bytes=_vmem_limit_bytes(),
        ),
    )(q, k, v)
    return out[:, :T, :] if Tp != T else out


# ----------------------------------------------------------------------------
# full module forward
# ----------------------------------------------------------------------------

def causal_self_attention(x, w_qkv, w_proj, b_proj, *, n_heads):
    """x: (B, T, C) f32; w_qkv: (C, 3C); w_proj: (C, C); b_proj: (C,)."""
    B, T, C = x.shape
    assert C % n_heads == 0
    H = n_heads
    D = C // H

    # One-time parameter prep (in a real model these live pre-converted):
    # bf16 weights, with 1/sqrt(D) folded into the Q columns of W_qkv.
    scale = 1.0 / math.sqrt(D)
    w_qkv_bf = w_qkv.at[:, :C].multiply(scale).astype(jnp.bfloat16)
    w_proj_bf = w_proj.astype(jnp.bfloat16)

    # 1) QKV projection (bias-free), bf16 in / bf16 out, f32 accumulation.
    x_bf = x.reshape(B * T, C).astype(jnp.bfloat16)
    qkv = _linear(x_bf, w_qkv_bf, None, out_dtype=jnp.bfloat16)   # (B*T, 3C)

    # 2) Split heads (wrapper-side layout plumbing, now at bf16 -> half bytes).
    qkv = qkv.reshape(B, T, 3, H, D).transpose(2, 0, 3, 1, 4)     # (3,B,H,T,D)
    q = qkv[0].reshape(B * H, T, D)
    k = qkv[1].reshape(B * H, T, D)
    v = qkv[2].reshape(B * H, T, D)

    # 3) Flash-style causal attention per (batch, head).
    attn = _flash_attention(q, k, v)                              # (B*H, T, D)

    # 4) Merge heads, output projection (with bias), f32 output.
    attn = attn.reshape(B, H, T, D).transpose(0, 2, 1, 3).reshape(B * T, C)
    out = _linear(attn, w_proj_bf, b_proj, out_dtype=jnp.float32) # (B*T, C)
    return out.reshape(B, T, C)


# ----------------------------------------------------------------------------
# pure-JAX reference (mirrors the PyTorch forward, eval mode)
# ----------------------------------------------------------------------------

def _reference(x, w_qkv, w_proj, b_proj, n_heads):
    B, T, C = x.shape
    D = C // n_heads
    qkv = x @ w_qkv
    q, k, v = jnp.split(qkv, 3, axis=-1)
    q = q.reshape(B, T, n_heads, D).transpose(0, 2, 1, 3)
    k = k.reshape(B, T, n_heads, D).transpose(0, 2, 1, 3)
    v = v.reshape(B, T, n_heads, D).transpose(0, 2, 1, 3)
    s = jnp.einsum("bhqd,bhkd->bhqk", q, k) / math.sqrt(D)
    mask = jnp.tril(jnp.ones((T, T), dtype=bool))
    s = jnp.where(mask, s, -jnp.inf)
    p = jax.nn.softmax(s, axis=-1)
    o = jnp.einsum("bhqk,bhkd->bhqd", p, v)
    o = o.transpose(0, 2, 1, 3).reshape(B, T, C)
    return o @ w_proj + b_proj


if __name__ == "__main__":
    B, T, C, n_heads = 2, 8, 32, 4

    key = jax.random.PRNGKey(0)
    kx, kqkv, kp, kb = jax.random.split(key, 4)

    bound = 1.0 / math.sqrt(C)
    w_qkv = jax.random.uniform(kqkv, (C, 3 * C), jnp.float32, -bound, bound)
    w_proj = jax.random.uniform(kp, (C, C), jnp.float32, -bound, bound)
    b_proj = jax.random.uniform(kb, (C,), jnp.float32, -bound, bound)
    x = jax.random.normal(kx, (B, T, C), jnp.float32)

    out = causal_self_attention(x, w_qkv, w_proj, b_proj, n_heads=n_heads)
    out = jax.block_until_ready(out)

    ref = _reference(x, w_qkv, w_proj, b_proj, n_heads)
    assert out.shape == (B, T, C)
    # bf16 MXU inputs / bf16 activation traffic -> loosened tolerance vs f32.
    assert jnp.allclose(out, ref, atol=2e-2, rtol=2e-2), "mismatch vs reference"

    print("KERNEL_OK")
</pallas_src>

<mosaic_0001>
module attributes {stable_mosaic.version = 11 : i64} {
  func.func @_matmul_kernel(%arg0: i32, %arg1: i32, %arg2: i32, %arg3: memref<16x32xbf16, #tpu.memory_space<vmem>>, %arg4: memref<32x96xbf16, #tpu.memory_space<vmem>>, %arg5: memref<16x96xbf16, #tpu.memory_space<vmem>>, %arg6: memref<16x96xf32, #tpu.memory_space<vmem>>) attributes {dimension_semantics = [#tpu.dimension_semantics<parallel>, #tpu.dimension_semantics<parallel>, #tpu.dimension_semantics<arbitrary>], iteration_bounds = array<i64: 1, 1, 1>, scalar_prefetch = 0 : i64, scratch_operands = 1 : i64, tpu.core_type = #tpu.core_type<tc>, window_params = [{transform_indices = @transform_0, window_bounds = array<i64: 16, 32>}, {transform_indices = @transform_1, window_bounds = array<i64: 32, 96>}, {transform_indices = @transform_2, window_bounds = array<i64: 16, 96>}]} {
    %c0_i32 = arith.constant 0 : i32
    %0 = arith.cmpi eq, %arg2, %c0_i32 : i32
    %1 = arith.extui %0 : i1 to i32
    %c0_i32_0 = arith.constant 0 : i32
    %2 = arith.cmpi ne, %1, %c0_i32_0 : i32
    scf.if %2 {
      %cst_10 = arith.constant 0.000000e+00 : f32
      %12 = vector.broadcast %cst_10 : f32 to vector<16x96xf32>
      %c0_11 = arith.constant 0 : index
      %c0_12 = arith.constant 0 : index
      %13 = vector.load %arg6[%c0_11, %c0_12] : memref<16x96xf32, #tpu.memory_space<vmem>>, vector<16x96xf32>
      tpu.vector_store %arg6[%c0_11, %c0_12], %12 {strides = array<i32>} : memref<16x96xf32, #tpu.memory_space<vmem>>, vector<16x96xf32>,
    } else {
    }
    %c0 = arith.constant 0 : index
    %c0_1 = arith.constant 0 : index
    %3 = vector.load %arg6[%c0, %c0_1] : memref<16x96xf32, #tpu.memory_space<vmem>>, vector<16x96xf32>
    %c0_2 = arith.constant 0 : index
    %c0_3 = arith.constant 0 : index
    %4 = vector.load %arg3[%c0_2, %c0_3] : memref<16x32xbf16, #tpu.memory_space<vmem>>, vector<16x32xbf16>
    %c0_4 = arith.constant 0 : index
    %c0_5 = arith.constant 0 : index
    %5 = vector.load %arg4[%c0_4, %c0_5] : memref<32x96xbf16, #tpu.memory_space<vmem>>, vector<32x96xbf16>
    %cst = arith.constant dense<0.000000e+00> : vector<16x96xf32>
    %6 = tpu.matmul %4, %5, %cst {dimension_numbers = #tpu.dot_dimension_numbers<[1], [0], [0], [1], [0, 0, 1, 1], [], []>} : vector<16x32xbf16>, vector<32x96xbf16>, vector<16x96xf32> -> vector<16x96xf32>
    %7 = arith.addf %3, %6 : vector<16x96xf32>
    %c0_6 = arith.constant 0 : index
    %c0_7 = arith.constant 0 : index
    %8 = vector.load %arg6[%c0_6, %c0_7] : memref<16x96xf32, #tpu.memory_space<vmem>>, vector<16x96xf32>
    tpu.vector_store %arg6[%c0_6, %c0_7], %7 {strides = array<i32>} : memref<16x96xf32, #tpu.memory_space<vmem>>, vector<16x96xf32>,
    %c0_i32_8 = arith.constant 0 : i32
    %9 = arith.cmpi eq, %arg2, %c0_i32_8 : i32
    %10 = arith.extui %9 : i1 to i32
    %c0_i32_9 = arith.constant 0 : i32
    %11 = arith.cmpi ne, %10, %c0_i32_9 : i32
    scf.if %11 {
      %c0_10 = arith.constant 0 : index
      %c0_11 = arith.constant 0 : index
      %12 = vector.load %arg6[%c0_10, %c0_11] : memref<16x96xf32, #tpu.memory_space<vmem>>, vector<16x96xf32>
      %13 = arith.truncf %12 : vector<16x96xf32> to vector<16x96xbf16>
      %c0_12 = arith.constant 0 : index
      %c0_13 = arith.constant 0 : index
      %14 = vector.load %arg5[%c0_12, %c0_13] : memref<16x96xbf16, #tpu.memory_space<vmem>>, vector<16x96xbf16>
      tpu.vector_store %arg5[%c0_12, %c0_13], %13 {strides = array<i32>} : memref<16x96xbf16, #tpu.memory_space<vmem>>, vector<16x96xbf16>,
    } else {
    }
    return
  }
  func.func @transform_0(%arg0: i32, %arg1: i32, %arg2: i32) -> (i32, i32) {
    %c0_i32 = arith.constant 0 : i32
    return %arg0, %arg2 : i32, i32
  }
  func.func @transform_1(%arg0: i32, %arg1: i32, %arg2: i32) -> (i32, i32) {
    %c0_i32 = arith.constant 0 : i32
    return %arg2, %arg1 : i32, i32
  }
  func.func @transform_2(%arg0: i32, %arg1: i32, %arg2: i32) -> (i32, i32) {
    %c0_i32 = arith.constant 0 : i32
    return %arg0, %arg1 : i32, i32
  }
}

</mosaic_0001>

<llo_original>
// kernel: tpu_custom_call.1
$region0: #{tpu_custom_call.1}
  #allocation0 [shape = 'u32[]', space=smem, size = 0x4, offset = 0x4, fixed_abs, tag = 'smem constant byte address 0x4 - core index']
  #allocation1 [shape = 'u32[144,128]{1,0:T(1,128)}', space=vmem, size = 0x12000, scoped, tag = 'internal scratch']
  #allocation2 [shape = 'f32[16,96]{1,0:T(8,128)}', space=vmem, size = 0x2000, scoped, tag = 'scratch operand']
  %s0 = inlined_call_operand.hbm [shape: bf16[16,32], index: 0, kind: input, shape index: {}]
  %s1 = inlined_call_operand.hbm [shape: bf16[32,96], index: 1, kind: input, shape index: {}]
  %s2 = inlined_call_operand.hbm [shape: bf16[16,96], index: 2, kind: output, shape index: {}]
  %s3 = sld [smem:[#allocation0]]
  $region34: #{tpu_custom_call.1} parent=0
    _
  %s5 = ssub.s32 1, %s3
  %s6 = scalar_select 0, %s5, %s3
  $region1: #{tpu_custom_call.1} parent=0
    #allocation3 [shape = 'u8[4096]{0}', space=vmem, size = 0x1000, scoped, tag = 'input window, operand 0, single buffered']
    #allocation4 [shape = 's32[1]{0}', space=sflag, size = 0x4, scoped, tag = 'scoped memory for tpu_custom_call.1']
    #allocation5 [shape = 's32[1]{0}', space=sflag, size = 0x4, scoped, tag = 'scoped memory for tpu_custom_call.1']
    #allocation6 [shape = 'u8[8192]{0}', space=vmem, size = 0x2000, scoped, tag = 'input window, operand 1, single buffered']
    #allocation7 [shape = 's32[1]{0}', space=sflag, size = 0x4, scoped, tag = 'scoped memory for tpu_custom_call.1']
    #allocation8 [shape = 'u8[4096]{0}', space=vmem, size = 0x1000, scoped, tag = 'output window, operand 0, single buffered']
    %7 = vsyncpa [#allocation4], 0
    %8 = vsyncpa [#allocation7], 0
    %9 = vsyncpa [#allocation5], 0
    // Predicated region
    $region2: #{tpu_custom_call.1} parent=1 // pred_check
      _
    $region3: #{tpu_custom_call.1} parent=1 // pred_check_branch
      %11 = sbr.rel (0) target = $region5
    $region4: #{tpu_custom_call.1} parent=1 // pred_region
      %s13 = ssub.s32 128, 128
      %14 = vsyncadd [#allocation4], %s13
      %s15 = sshll.u32 [#allocation3], 4
      %s16 = int_to_ptr.vmem [resolvable:$true] %s15
      %21 = dma.hbm_to_vmem [thread:$0]  %s0, 128, %s16, [#allocation4], 64, 64, 4
    $region5: #{tpu_custom_call.1} parent=1 // pred_fallthru
      _
    // Predicated region
    $region6: #{tpu_custom_call.1} parent=1 // pred_check
      _
    $region7: #{tpu_custom_call.1} parent=1 // pred_check_branch
      %23 = sbr.rel (0) target = $region9
    $region8: #{tpu_custom_call.1} parent=1 // pred_region
      %s25 = ssub.s32 256, 256
      %26 = vsyncadd [#allocation7], %s25
      %s27 = sshll.u32 [#allocation6], 4
      %s28 = int_to_ptr.vmem [resolvable:$true] %s27
      %33 = dma.hbm_to_vmem [thread:$0]  %s1, 256, %s28, [#allocation7], 64, 64, 4
    $region9: #{tpu_custom_call.1} parent=1 // pred_fallthru
      _
    // Predicated region
    $region10: #{tpu_custom_call.1} parent=1 // pred_check
      _
    $region11: #{tpu_custom_call.1} parent=1 // pred_check_branch
      %35 = sbr.rel (0) target = $region13
    $region12: #{tpu_custom_call.1} parent=1 // pred_region
      %36 = dma.done [#allocation4], 128
    $region13: #{tpu_custom_call.1} parent=1 // pred_fallthru
      _
    // Predicated region
    $region14: #{tpu_custom_call.1} parent=1 // pred_check
      _
    $region15: #{tpu_custom_call.1} parent=1 // pred_check_branch
      %38 = sbr.rel (0) target = $region17
    $region16: #{tpu_custom_call.1} parent=1 // pred_region
      %39 = dma.done [#allocation7], 256
    $region17: #{tpu_custom_call.1} parent=1 // pred_fallthru
      _
    %p41 = scmp.eq.s32.totalorder 0, 0
    // Predicated region
    $region18: #{tpu_custom_call.1} parent=1 // pred_check
      %p42 = pneg %p41
    $region19: #{tpu_custom_call.1} parent=1 // pred_check_branch
      %44 = sbr.rel (%p42) target = $region21
    $region20: #{tpu_custom_call.1} parent=1 // pred_region
      %vm45 = vcmask 785408
      %46 = vst.msk [vmem:[#allocation2] sm:$0xff] %vm45, 0.0
      %47 = vst.msk [vmem:[#allocation2 + $0x8] sm:$0xff] %vm45, 0.0
    $region21: #{tpu_custom_call.1} parent=1 // pred_fallthru
      _
    %v48 = vld [vmem:[#allocation2] sm:$0xff]
    %v49 = vld [vmem:[#allocation2 + $0x8] sm:$0xff]
    %v50 = vld [vmem:[#allocation3] sm:$0xf]
    %v51 = vld [vmem:[#allocation3 + $0x4] sm:$0xf]
    %v52 = vld [vmem:[#allocation6] sm:$0xf]
    %v53 = vld [vmem:[#allocation6 + $0x4] sm:$0xf]
    %v54 = vld [vmem:[#allocation6 + $0x8] sm:$0xf]
    %v55 = vld [vmem:[#allocation6 + $0xc] sm:$0xf]
    %v58 = vunpack.c.l.b16 %v50
    %v59 = vunpack.c.l.b16 %v51
    %v60 = vpack.c.b16 %v59, %v58
    %v65 = vunpack.c.l.b16 %v52
    %v66 = vunpack.c.l.b16 %v53
    %v67 = vunpack.c.l.b16 %v54
    %v68 = vunpack.c.l.b16 %v55
    %v69 = vpack.c.b16 %v66, %v65
    %v70 = vpack.c.b16 %v68, %v67
    %vm73 = vcmask 261120
    %v75 = vsel %vm73, %v60, 0
    %77 = vmatprep.subr.bf16.mxu0 0
    %78 = vmatpush1.bf16.msra.mxu0 %v69
    %79 = vmatprep.subr.bf16.mxu0 0
    %80 = vmatpush1.bf16.msra.mxu0 %v70
    %81 = vmatprep.subr.bf16.mxu0 0
    %82 = vmatpush1.bf16.msra.mxu0 0
    %83 = vmatprep.subr.bf16.mxu0 0
    %84 = vmatpush1.bf16.msra.mxu0 0
    %85 = vmatprep.subr.bf16.mxu0 0
    %86 = vmatpush1.bf16.msra.mxu0 0
    %87 = vmatprep.subr.bf16.mxu0 0
    %88 = vmatpush1.bf16.msra.mxu0 0
    %89 = vmatprep.subr.bf16.mxu0 0
    %90 = vmatpush1.bf16.msra.mxu0 0
    %91 = vmatprep.subr.bf16.mxu0 0
    %92 = vmatpush1.bf16.msra.mxu0 0
    %93 = vmatprep.subr.bf16.mxu0 0
    %94 = vmatpush1.bf16.msra.mxu0 0
    %95 = vmatprep.subr.bf16.mxu0 0
    %96 = vmatpush1.bf16.msra.mxu0 0
    %97 = vmatprep.subr.bf16.mxu0 0
    %98 = vmatpush1.bf16.msra.mxu0 0
    %99 = vmatprep.subr.bf16.mxu0 0
    %100 = vmatpush1.bf16.msra.mxu0 0
    %101 = vmatprep.subr.bf16.mxu0 0
    %102 = vmatpush1.bf16.msra.mxu0 0
    %103 = vmatprep.subr.bf16.mxu0 0
    %104 = vmatpush1.bf16.msra.mxu0 0
    %105 = vmatprep.subr.bf16.mxu0 0
    %106 = vmatpush1.bf16.msra.mxu0 0
    %107 = vmatprep.subr.bf16.mxu0 0
    %108 = vmatpush1.bf16.msra.mxu0 0
    %109 = vmatprep.mubr.bf16.mxu0 0
    %110 = vmatmul.mubr.bf16.gmra.mrb[0].mxu0 %v75
    %v111 = vpop.f32.mrb[0].mxu0
    %v112 = vadd.f32 0.0, %v111
    %v113 = vpop.f32.mrb[0].mxu0
    %v114 = vpop.f32.mrb[0].mxu0
    %v115 = vadd.f32 0.0, %v114
    %v116 = vpop.f32.mrb[0].mxu0
    %117 = vdwg.mxu0
    %v118 = vadd.f32 %v48, %v112
    %v119 = vadd.f32 %v49, %v115
    %vm120 = vcmask 785408
    %121 = vst.msk [vmem:[#allocation2] sm:$0xff] %vm120, %v118
    %122 = vst.msk [vmem:[#allocation2 + $0x8] sm:$0xff] %vm120, %v119
    // Predicated region
    $region22: #{tpu_custom_call.1} parent=1 // pred_check
      %p123 = pneg %p41
    $region23: #{tpu_custom_call.1} parent=1 // pred_check_branch
      %125 = sbr.rel (%p123) target = $region25
    $region24: #{tpu_custom_call.1} parent=1 // pred_region
      %v126 = vld [vmem:[#allocation2] sm:$0xff]
      %v127 = vld [vmem:[#allocation2 + $0x8] sm:$0xff]
      %v128 = vpack.c.bf16 %v127, %v126
      %v130 = vunpack.c.l.b16 %v128
      %v131 = vunpack.c.h.b16 %v128
      %v132 = vpack.c.b16 %v130, %v130
      %v133 = vpack.c.b16 %v131, %v131
      %vm136 = vcmask 781312
      %137 = vst.msk [vmem:[#allocation8] sm:$0xf] %vm136, %v132
      %138 = vst.msk [vmem:[#allocation8 + $0x4] sm:$0xf] %vm136, %v133
    $region25: #{tpu_custom_call.1} parent=1 // pred_fallthru
      _
    // Predicated region
    $region26: #{tpu_custom_call.1} parent=1 // pred_check
      _
    $region27: #{tpu_custom_call.1} parent=1 // pred_check_branch
      %140 = sbr.rel (0) target = $region29
    $region28: #{tpu_custom_call.1} parent=1 // pred_region
      %s142 = ssub.s32 128, 128
      %143 = vsyncadd [#allocation5], %s142
      %s144 = sshll.u32 [#allocation8], 4
      %s145 = int_to_ptr.vmem [resolvable:$true] %s144
      %150 = dma.vmem_to_hbm [thread:$0]  %s145, 128, %s2, [#allocation5], 64, 64, 4
    $region29: #{tpu_custom_call.1} parent=1 // pred_fallthru
      _
    // Predicated region
    $region30: #{tpu_custom_call.1} parent=1 // pred_check
      _
    $region31: #{tpu_custom_call.1} parent=1 // pred_check_branch
      %152 = sbr.rel (0) target = $region33
    $region32: #{tpu_custom_call.1} parent=1 // pred_region
      %153 = dma.done [#allocation5], 128
    $region33: #{tpu_custom_call.1} parent=1 // pred_fallthru
      _
    %154 = vsyncpa [#allocation4], 1
    %155 = vsyncpa [#allocation7], 1
    %156 = vsyncpa [#allocation5], 1

</llo_original>
